<compile_context>
chip_gen: v6e
topology: v6e:2x2x1
jax: 0.10.0
libtpu: 0.0.40
codegen_flags: <defaults>
</compile_context>

<pallas_src>
import functools

import jax
import jax.numpy as jnp
from jax import lax
from jax.experimental import pallas as pl
from jax.experimental.pallas import tpu as pltpu


def _round_up(a, b):
    return (a + b - 1) // b * b


def _vmem_capacity_bytes():
    """Physical VMEM per core; conservative default if the query fails."""
    try:
        cap = int(pltpu.get_tpu_info().vmem_capacity_bytes)
        if cap > 0:
            return cap
    except Exception:
        pass
    return 64 << 20  # v7x-sized conservative default


def _vmem_limit(working_set_bytes, cap):
    lo = 32 << 20
    hi = max(lo, cap - (4 << 20))            # never request more than physical VMEM
    return int(min(max(working_set_bytes + (8 << 20), lo), hi))


def _channel_gate(y, w_ref, *, k, c_true, row0=0):
    """k-tap zero-padded conv across channels + sigmoid.

    y:     (Cb, 1) float32 pooled means; row r corresponds to global channel
           row0 + r.  Rows whose global channel is outside [0, c_true) may
           hold garbage (ragged blocks / clamped halos); the per-tap mask
           guarantees they never contribute to valid rows.
    w_ref: (k,) float32 conv taps in SMEM.
    Returns (Cb, 1) float32 gate.  Garbage rows are don't-care.
    """
    cb = y.shape[0]                              # multiple of 8 at every call site
    pad = (k - 1) // 2
    taps = [w_ref[j] for j in range(k)]          # hoisted SMEM scalar reads
    # Lane-replicate so the roll operates on a fully (8,128)-aligned tile.
    yb = jnp.broadcast_to(y, (cb, 128))
    gch = lax.broadcasted_iota(jnp.int32, (cb, 128), 0) + row0   # global channel
    conv = jnp.zeros((cb, 128), jnp.float32)
    for j in range(k):                           # k is a small static Python int
        s = j - pad                              # channel offset of this tap
        if s == 0:
            shifted = yb
        else:
            # shifted[r] = y[(r + s) mod cb]  (XLU sublane rotate)
            shifted = pltpu.roll(yb, shift=(-s) % cb, axis=0)
        src = gch + s                            # true channel feeding this tap
        valid = jnp.logical_and(src >= 0, src < c_true)
        conv = conv + taps[j] * jnp.where(valid, shifted, jnp.float32(0.0))
    # All 128 lanes are identical by construction; take lane 0 (no XLU reduce).
    return jax.nn.sigmoid(conv[:, 0:1])


# ---------------------------------------------------------------------------
# Fused one-pass kernel: pool + conv + sigmoid + gating multiply per batch.
# ---------------------------------------------------------------------------
def _eca_fused_kernel(w_ref, x_ref, o_ref, *, k, c_true, hw_true):
    # x_ref/o_ref: (1, Cb, HW) blocks.  HW is the exact, unpadded spatial
    # extent (full dim), so the sum below is exact; channel rows >= c_true
    # (ragged block) are masked inside _channel_gate and dropped on store.
    ssum = jnp.sum(x_ref[0], axis=1, keepdims=True, dtype=jnp.float32)   # (Cb, 1)
    y = ssum * jnp.float32(1.0 / hw_true)
    gate = _channel_gate(y, w_ref, k=k, c_true=c_true)                   # (Cb, 1) f32
    o_ref[0] = x_ref[0] * gate.astype(o_ref.dtype)


# ---------------------------------------------------------------------------
# C-tiled fused kernel: same single pass, grid (B, n_c), 8-channel halos.
# ---------------------------------------------------------------------------
def _eca_ctile_kernel(w_ref, x_ref, xp_ref, xn_ref, o_ref, *, k, c_true, c_tile,
                      hw_true):
    # x_ref/o_ref: (1, c_tile, HW); xp_ref/xn_ref: (1, 8, HW) halo blocks
    # (block index clamped at the channel boundaries; clamped / ragged rows
    # are neutralised by the global-channel tap mask).
    c0 = pl.program_id(1) * c_tile               # global channel of main row 0
    inv = jnp.float32(1.0 / hw_true)
    s_prev = jnp.sum(xp_ref[0], axis=1, keepdims=True, dtype=jnp.float32)  # (8, 1)
    s_main = jnp.sum(x_ref[0], axis=1, keepdims=True, dtype=jnp.float32)   # (c_tile, 1)
    s_next = jnp.sum(xn_ref[0], axis=1, keepdims=True, dtype=jnp.float32)  # (8, 1)
    y_ext = jnp.concatenate([s_prev, s_main, s_next], axis=0) * inv        # (c_tile+16, 1)
    gate = _channel_gate(y_ext, w_ref, k=k, c_true=c_true, row0=c0 - 8)
    o_ref[0] = x_ref[0] * gate[8:8 + c_tile, :].astype(o_ref.dtype)


# ---------------------------------------------------------------------------
# Two-pass fallback: (1) pooled-mean accumulation + gate, (2) gating multiply.
# ---------------------------------------------------------------------------
def _eca_gate_kernel(w_ref, x_ref, g_ref, acc_ref, *, k, c_true, hw_true, t_hw):
    h = pl.program_id(1)
    n_h = pl.num_programs(1)

    @pl.when(h == 0)
    def _init():
        acc_ref[...] = jnp.zeros_like(acc_ref)

    xs = x_ref[0]                                 # (Cb, t_hw)
    rem = hw_true % t_hw
    if rem:  # static: last tile is partial -> mask the out-of-range lanes
        col = lax.broadcasted_iota(jnp.int32, xs.shape, 1)
        valid = jnp.logical_or(h != n_h - 1, col < rem)
        xs = jnp.where(valid, xs, jnp.zeros((), xs.dtype))
    acc_ref[...] += jnp.sum(xs, axis=1, keepdims=True, dtype=jnp.float32)

    @pl.when(h == n_h - 1)
    def _finalize():
        y = acc_ref[...] * jnp.float32(1.0 / hw_true)
        g_ref[0] = _channel_gate(y, w_ref, k=k, c_true=c_true)


def _eca_mul_kernel(x_ref, g_ref, o_ref):
    o_ref[0] = x_ref[0] * g_ref[0].astype(o_ref.dtype)


# ---------------------------------------------------------------------------
# Wrapper
# ---------------------------------------------------------------------------
def eca_forward(x, conv_weight, *, path=None, hw_tile=None, c_tile=None):
    """x: (B, C, H, W); conv_weight: (1, 1, k) (or (k,)). Returns (B, C, H, W)."""
    B, C, H, W = x.shape
    HW = H * W
    k = int(conv_weight.shape[-1])
    pad = (k - 1) // 2
    w = conv_weight.reshape(-1).astype(jnp.float32)       # (k,) taps, f32
    itemsize = jnp.dtype(x.dtype).itemsize

    Cb = _round_up(C, 8)            # sublane-aligned channel block extent
    HW128 = _round_up(HW, 128)      # lane-padded VMEM footprint of the HW axis

    cap = _vmem_capacity_bytes()
    fused_ws = 4 * Cb * HW128 * itemsize          # in + out, double buffered

    x_flat = x.reshape(B, C, HW)    # contiguity-preserving: no copy, no pad

    # ---- path selection (generation-aware) --------------------------------
    if path is None:
        if fused_ws <= int(cap * 0.75):
            path = "fused"
            # 64 MiB-VMEM parts (v7x) have 2 TensorCores: with B == 1 the
            # fused grid (B,) has a single parallel item, so split over C.
            if (B == 1 and cap <= (80 << 20) and C >= 128 and pad <= 8
                    and Cb * HW128 * itemsize >= (4 << 20)):
                path = "ctile"
        elif pad <= 8:
            path = "ctile"
        else:
            path = "two_pass"

    c_tile_eff = None
    if path == "ctile":
        assert pad <= 8, "ctile path supports k <= 17; use two_pass otherwise"
        budget = int(cap * 0.75)
        if c_tile is not None:
            c_tile_eff = min(_round_up(max(int(c_tile), 8), 8), Cb)
        else:
            ct = (budget // (2 * HW128 * itemsize) - 16) // 2
            ct = ct // 8 * 8
            if B == 1 and cap <= (80 << 20):
                ct = min(ct, _round_up(pl.cdiv(Cb, 2), 8))   # >= 2 tiles for 2 TCs
            ct = min(ct, Cb)
            if ct < 32:
                path = "two_pass"     # halo overhead too high / tile doesn't fit
            else:
                c_tile_eff = ct

    # ---- fused one-pass path ----------------------------------------------
    if path == "fused":
        out_flat = pl.pallas_call(
            functools.partial(_eca_fused_kernel, k=k, c_true=C, hw_true=HW),
            out_shape=jax.ShapeDtypeStruct((B, C, HW), x.dtype),
            grid_spec=pltpu.PrefetchScalarGridSpec(
                num_scalar_prefetch=0,
                grid=(B,),
                in_specs=[
                    pl.BlockSpec(memory_space=pltpu.SMEM),            # conv taps
                    pl.BlockSpec((1, Cb, HW), lambda b: (b, 0, 0)),   # x slab
                ],
                out_specs=pl.BlockSpec((1, Cb, HW), lambda b: (b, 0, 0)),
            ),
            compiler_params=pltpu.CompilerParams(
                dimension_semantics=("parallel",),
                vmem_limit_bytes=_vmem_limit(fused_ws, cap),
            ),
        )(w, x_flat)

    # ---- C-tiled fused path (still a single HBM pass over x) --------------
    elif path == "ctile":
        ct = c_tile_eff
        cb8 = ct // 8
        n_c = pl.cdiv(C, ct)
        n_cb8 = Cb // 8                     # number of 8-row halo blocks along C
        ctile_ws = 2 * (2 * ct + 16) * HW128 * itemsize
        out_flat = pl.pallas_call(
            functools.partial(_eca_ctile_kernel, k=k, c_true=C, c_tile=ct,
                              hw_true=HW),
            out_shape=jax.ShapeDtypeStruct((B, C, HW), x.dtype),
            grid_spec=pltpu.PrefetchScalarGridSpec(
                num_scalar_prefetch=0,
                grid=(B, n_c),
                in_specs=[
                    pl.BlockSpec(memory_space=pltpu.SMEM),
                    pl.BlockSpec((1, ct, HW), lambda b, c: (b, c, 0)),
                    # previous / next 8-channel halos (block index clamped)
                    pl.BlockSpec((1, 8, HW),
                                 lambda b, c: (b, jnp.maximum(c * cb8 - 1, 0), 0)),
                    pl.BlockSpec((1, 8, HW),
                                 lambda b, c: (b, jnp.minimum((c + 1) * cb8,
                                                              n_cb8 - 1), 0)),
                ],
                out_specs=pl.BlockSpec((1, ct, HW), lambda b, c: (b, c, 0)),
            ),
            compiler_params=pltpu.CompilerParams(
                dimension_semantics=("parallel", "parallel"),
                vmem_limit_bytes=_vmem_limit(ctile_ws, cap),
            ),
        )(w, x_flat, x_flat, x_flat)

    # ---- two-pass fallback --------------------------------------------------
    elif path == "two_pass":
        budget = max(16 << 20, min(cap // 3, 64 << 20))
        if hw_tile is None:
            t_max = max(128, (budget // (4 * Cb * itemsize)) // 128 * 128)
        else:
            t_max = _round_up(max(int(hw_tile), 128), 128)
        t_max = min(t_max, HW128)
        n_hw = pl.cdiv(HW128, t_max)
        t_hw = min(_round_up(pl.cdiv(HW128, n_hw), 128), HW128)   # balanced tiles
        n_hw = pl.cdiv(HW, t_hw)
        blk = Cb * t_hw * itemsize

        # Pass 1: pooled mean (accumulated over HW tiles) -> channel conv -> sigmoid.
        gates = pl.pallas_call(
            functools.partial(_eca_gate_kernel, k=k, c_true=C, hw_true=HW,
                              t_hw=t_hw),
            out_shape=jax.ShapeDtypeStruct((B, Cb, 1), jnp.float32),
            grid_spec=pltpu.PrefetchScalarGridSpec(
                num_scalar_prefetch=0,
                grid=(B, n_hw),
                in_specs=[
                    pl.BlockSpec(memory_space=pltpu.SMEM),
                    pl.BlockSpec((1, Cb, t_hw), lambda b, h: (b, 0, h)),
                ],
                out_specs=pl.BlockSpec((1, Cb, 1), lambda b, h: (b, 0, 0)),
                scratch_shapes=[pltpu.VMEM((Cb, 1), jnp.float32)],
            ),
            compiler_params=pltpu.CompilerParams(
                dimension_semantics=("parallel", "arbitrary"),
                vmem_limit_bytes=_vmem_limit(2 * blk, cap),
            ),
        )(w, x_flat)

        # Pass 2: lane-dense gating multiply, both grid axes parallel.
        out_flat = pl.pallas_call(
            _eca_mul_kernel,
            out_shape=jax.ShapeDtypeStruct((B, C, HW), x.dtype),
            grid_spec=pltpu.PrefetchScalarGridSpec(
                num_scalar_prefetch=0,
                grid=(B, n_hw),
                in_specs=[
                    pl.BlockSpec((1, Cb, t_hw), lambda b, h: (b, 0, h)),
                    pl.BlockSpec((1, Cb, 1), lambda b, h: (b, 0, 0)),
                ],
                out_specs=pl.BlockSpec((1, Cb, t_hw), lambda b, h: (b, 0, h)),
            ),
            compiler_params=pltpu.CompilerParams(
                dimension_semantics=("parallel", "parallel"),
                vmem_limit_bytes=_vmem_limit(4 * blk, cap),
            ),
        )(x_flat, gates)
    else:
        raise ValueError(f"unknown path: {path!r}")

    return out_flat.reshape(B, C, H, W)


def eca_reference(x, conv_weight):
    """Pure-JAX reference matching the PyTorch module."""
    B, C, H, W = x.shape
    w = conv_weight.reshape(-1).astype(jnp.float32)
    k = w.shape[0]
    pad = (k - 1) // 2
    y = jnp.mean(x.astype(jnp.float32), axis=(2, 3))          # (B, C)
    y_pad = jnp.pad(y, ((0, 0), (pad, pad)))                  # zero pad along channels
    conv = jnp.zeros_like(y)
    for j in range(k):
        conv = conv + w[j] * y_pad[:, j:j + C]
    gate = jax.nn.sigmoid(conv)                               # (B, C)
    return x * gate[:, :, None, None].astype(x.dtype)


if __name__ == "__main__":
    key = jax.random.PRNGKey(0)
    kx, kw, kx2, kw2 = jax.random.split(key, 4)

    # Case 1: typical small ECA shapes.  C=4 (< one 8-row sublane tile) and
    # HW=196 (not a multiple of 128) exercise the unpadded full-dim / ragged
    # blocks on the fused path and the masked partial tile on the two-pass path.
    B, C, H, W, ks = 2, 4, 14, 14, 3
    x = jax.random.normal(kx, (B, C, H, W), dtype=jnp.float32)
    conv_weight = jax.random.normal(kw, (1, 1, ks), dtype=jnp.float32) * 0.5
    ref = eca_reference(x, conv_weight)

    out_auto = jax.block_until_ready(eca_forward(x, conv_weight))
    out_fused = jax.block_until_ready(eca_forward(x, conv_weight, path="fused"))
    out_2p = jax.block_until_ready(
        eca_forward(x, conv_weight, path="two_pass", hw_tile=128))
    for out in (out_auto, out_fused, out_2p):
        assert out.shape == x.shape and out.dtype == x.dtype
        assert jnp.allclose(out, ref, atol=1e-5, rtol=1e-5)

    # Case 2: C-tiled fused path with halos (k=5 -> pad=2), partial last
    # channel tile (C=20, c_tile=8) and halo clamping at both boundaries.
    B2, C2, H2, W2, ks2 = 2, 20, 9, 9, 5
    x2 = jax.random.normal(kx2, (B2, C2, H2, W2), dtype=jnp.float32)
    conv_weight2 = jax.random.normal(kw2, (1, 1, ks2), dtype=jnp.float32) * 0.5
    ref2 = eca_reference(x2, conv_weight2)

    out_ct = jax.block_until_ready(
        eca_forward(x2, conv_weight2, path="ctile", c_tile=8))
    assert out_ct.shape == x2.shape and out_ct.dtype == x2.dtype
    assert jnp.allclose(out_ct, ref2, atol=1e-5, rtol=1e-5)

    print("KERNEL_OK")
</pallas_src>

<mosaic_0001>
module attributes {stable_mosaic.version = 11 : i64} {
  func.func @_eca_fused_kernel(%arg0: i32, %arg1: memref<3xf32, #tpu.memory_space<smem>>, %arg2: memref<1x8x196xf32, #tpu.memory_space<vmem>>, %arg3: memref<1x8x196xf32, #tpu.memory_space<vmem>>) attributes {dimension_semantics = [#tpu.dimension_semantics<parallel>], iteration_bounds = array<i64: 2>, scalar_prefetch = 0 : i64, scratch_operands = 0 : i64, tpu.core_type = #tpu.core_type<tc>, window_params = [{transform_indices = @transform_0, window_bounds = array<i64: 3>}, {transform_indices = @transform_1, window_bounds = array<i64: 1, 8, 196>}, {transform_indices = @transform_2, window_bounds = array<i64: 1, 8, 196>}]} {
    %c0 = arith.constant 0 : index
    %c0_0 = arith.constant 0 : index
    %c0_1 = arith.constant 0 : index
    %0 = vector.load %arg2[%c0, %c0_0, %c0_1] : memref<1x8x196xf32, #tpu.memory_space<vmem>>, vector<1x8x196xf32>
    %1 = vector.shape_cast %0 : vector<1x8x196xf32> to vector<8x196xf32>
    %cst = arith.constant dense<0.000000e+00> : vector<8xf32>
    %2 = vector.multi_reduction <add>, %1, %cst [1] : vector<8x196xf32> to vector<8xf32>
    %3 = vector.shape_cast %2 : vector<8xf32> to vector<8x1xf32>
    %cst_2 = arith.constant 0.00510204071 : f32
    %4 = vector.broadcast %cst_2 : f32 to vector<8x1xf32>
    %5 = arith.mulf %3, %4 : vector<8x1xf32>
    %c0_3 = arith.constant 0 : index
    %6 = memref.load %arg1[%c0_3] : memref<3xf32, #tpu.memory_space<smem>>
    %c1 = arith.constant 1 : index
    %7 = memref.load %arg1[%c1] : memref<3xf32, #tpu.memory_space<smem>>
    %c2 = arith.constant 2 : index
    %8 = memref.load %arg1[%c2] : memref<3xf32, #tpu.memory_space<smem>>
    %9 = vector.shape_cast %5 : vector<8x1xf32> to vector<8x1xf32>
    %10 = vector.broadcast %9 : vector<8x1xf32> to vector<8x128xf32>
    %11 = tpu.iota {dimensions = array<i32: 0>} : vector<8x128xi32>
    %c0_i32 = arith.constant 0 : i32
    %12 = vector.broadcast %c0_i32 : i32 to vector<8x128xi32>
    %13 = arith.addi %11, %12 : vector<8x128xi32>
    %cst_4 = arith.constant 0.000000e+00 : f32
    %14 = vector.broadcast %cst_4 : f32 to vector<8x128xf32>
    %c1_i32 = arith.constant 1 : i32
    %15 = tpu.dynamic_rotate %10 by %c1_i32 dim 0 : vector<8x128xf32>, i32 -> vector<8x128xf32>
    %c-1_i32 = arith.constant -1 : i32
    %16 = vector.broadcast %c-1_i32 : i32 to vector<8x128xi32>
    %17 = arith.addi %13, %16 : vector<8x128xi32>
    %c0_i32_5 = arith.constant 0 : i32
    %18 = vector.broadcast %c0_i32_5 : i32 to vector<8x128xi32>
    %19 = arith.cmpi sge, %17, %18 : vector<8x128xi32>
    %c4_i32 = arith.constant 4 : i32
    %20 = vector.broadcast %c4_i32 : i32 to vector<8x128xi32>
    %21 = arith.cmpi slt, %17, %20 : vector<8x128xi32>
    %22 = arith.andi %19, %21 : vector<8x128xi1>
    %cst_6 = arith.constant 0.000000e+00 : f32
    %23 = vector.broadcast %cst_6 : f32 to vector<8x128xf32>
    %24 = arith.select %22, %15, %23 : vector<8x128xi1>, vector<8x128xf32>
    %25 = vector.broadcast %6 : f32 to vector<8x128xf32>
    %26 = arith.mulf %25, %24 : vector<8x128xf32>
    %27 = arith.addf %14, %26 : vector<8x128xf32>
    %c0_i32_7 = arith.constant 0 : i32
    %28 = vector.broadcast %c0_i32_7 : i32 to vector<8x128xi32>
    %29 = arith.addi %13, %28 : vector<8x128xi32>
    %c0_i32_8 = arith.constant 0 : i32
    %30 = vector.broadcast %c0_i32_8 : i32 to vector<8x128xi32>
    %31 = arith.cmpi sge, %29, %30 : vector<8x128xi32>
    %c4_i32_9 = arith.constant 4 : i32
    %32 = vector.broadcast %c4_i32_9 : i32 to vector<8x128xi32>
    %33 = arith.cmpi slt, %29, %32 : vector<8x128xi32>
    %34 = arith.andi %31, %33 : vector<8x128xi1>
    %cst_10 = arith.constant 0.000000e+00 : f32
    %35 = vector.broadcast %cst_10 : f32 to vector<8x128xf32>
    %36 = arith.select %34, %10, %35 : vector<8x128xi1>, vector<8x128xf32>
    %37 = vector.broadcast %7 : f32 to vector<8x128xf32>
    %38 = arith.mulf %37, %36 : vector<8x128xf32>
    %39 = arith.addf %27, %38 : vector<8x128xf32>
    %c7_i32 = arith.constant 7 : i32
    %40 = tpu.dynamic_rotate %10 by %c7_i32 dim 0 : vector<8x128xf32>, i32 -> vector<8x128xf32>
    %c1_i32_11 = arith.constant 1 : i32
    %41 = vector.broadcast %c1_i32_11 : i32 to vector<8x128xi32>
    %42 = arith.addi %13, %41 : vector<8x128xi32>
    %c0_i32_12 = arith.constant 0 : i32
    %43 = vector.broadcast %c0_i32_12 : i32 to vector<8x128xi32>
    %44 = arith.cmpi sge, %42, %43 : vector<8x128xi32>
    %c4_i32_13 = arith.constant 4 : i32
    %45 = vector.broadcast %c4_i32_13 : i32 to vector<8x128xi32>
    %46 = arith.cmpi slt, %42, %45 : vector<8x128xi32>
    %47 = arith.andi %44, %46 : vector<8x128xi1>
    %cst_14 = arith.constant 0.000000e+00 : f32
    %48 = vector.broadcast %cst_14 : f32 to vector<8x128xf32>
    %49 = arith.select %47, %40, %48 : vector<8x128xi1>, vector<8x128xf32>
    %50 = vector.broadcast %8 : f32 to vector<8x128xf32>
    %51 = arith.mulf %50, %49 : vector<8x128xf32>
    %52 = arith.addf %39, %51 : vector<8x128xf32>
    %53 = vector.extract_strided_slice %52 {offsets = [0, 0], sizes = [8, 1], strides = [1, 1]} : vector<8x128xf32> to vector<8x1xf32>
    %54 = arith.negf %53 : vector<8x1xf32>
    %55 = math.exp %54 : vector<8x1xf32>
    %cst_15 = arith.constant 1.000000e+00 : f32
    %56 = vector.broadcast %cst_15 : f32 to vector<8x1xf32>
    %57 = arith.addf %56, %55 : vector<8x1xf32>
    %58 = arith.divf %56, %57 : vector<8x1xf32>
    %c0_16 = arith.constant 0 : index
    %c0_17 = arith.constant 0 : index
    %c0_18 = arith.constant 0 : index
    %59 = vector.load %arg2[%c0_16, %c0_17, %c0_18] : memref<1x8x196xf32, #tpu.memory_space<vmem>>, vector<1x8x196xf32>
    %60 = vector.shape_cast %59 : vector<1x8x196xf32> to vector<8x196xf32>
    %61 = vector.broadcast %58 : vector<8x1xf32> to vector<8x196xf32>
    %62 = arith.mulf %60, %61 : vector<8x196xf32>
    %c0_19 = arith.constant 0 : index
    %c0_20 = arith.constant 0 : index
    %c0_21 = arith.constant 0 : index
    %63 = vector.load %arg3[%c0_19, %c0_20, %c0_21] : memref<1x8x196xf32, #tpu.memory_space<vmem>>, vector<1x8x196xf32>
    %64 = vector.shape_cast %63 : vector<1x8x196xf32> to vector<8x196xf32>
    %65 = vector.shape_cast %62 : vector<8x196xf32> to vector<1x8x196xf32>
    tpu.vector_store %arg3[%c0_19, %c0_20, %c0_21], %65 {strides = array<i32>} : memref<1x8x196xf32, #tpu.memory_space<vmem>>, vector<1x8x196xf32>,
    return
  }
  func.func @transform_0(%arg0: i32) -> i32 {
    %c0_i32 = arith.constant 0 : i32
    %c0_i32_0 = arith.constant 0 : i32
    return %c0_i32 : i32
  }
  func.func @transform_1(%arg0: i32) -> (i32, i32, i32) {
    %c0_i32 = arith.constant 0 : i32
    %c0_i32_0 = arith.constant 0 : i32
    %c0_i32_1 = arith.constant 0 : i32
    return %arg0, %c0_i32, %c0_i32_0 : i32, i32, i32
  }
  func.func @transform_2(%arg0: i32) -> (i32, i32, i32) {
    %c0_i32 = arith.constant 0 : i32
    %c0_i32_0 = arith.constant 0 : i32
    %c0_i32_1 = arith.constant 0 : i32
    return %arg0, %c0_i32, %c0_i32_0 : i32, i32, i32
  }
}

</mosaic_0001>

<llo_original>
// kernel: tpu_custom_call.1
$region0: #{tpu_custom_call.1}
  #allocation0 [shape = 'u32[]', space=smem, size = 0x4, offset = 0x4, fixed_abs, tag = 'smem constant byte address 0x4 - core index']
  #allocation1 [shape = 'u32[144,128]{1,0:T(1,128)}', space=vmem, size = 0x12000, scoped, tag = 'internal scratch']
  %s0 = inlined_call_operand.hbm [shape: f32[3], index: 0, kind: input, shape index: {}]
  %s1 = inlined_call_operand.hbm [shape: f32[2,4,196], index: 1, kind: input, shape index: {}]
  %s2 = inlined_call_operand.hbm [shape: f32[2,4,196], index: 2, kind: output, shape index: {}]
  %s3 = sld [smem:[#allocation0]]
  $region49: #{tpu_custom_call.1} parent=0
    _
  %s5 = ssub.s32 1, %s3
  %s6 = scalar_select 0, %s5, %s3
  $region1: #{tpu_custom_call.1} parent=0
    #allocation2 [shape = 'u8[512]{0}', space=smem, size = 0x200, scoped, tag = 'input window, operand 0, single buffered']
    #allocation3 [shape = 's32[2]{0}', space=sflag, size = 0x8, scoped, tag = 'scoped memory for tpu_custom_call.1']
    #allocation4 [shape = 's32[2]{0}', space=sflag, size = 0x8, scoped, tag = 'scoped memory for tpu_custom_call.1']
    #allocation5 [shape = 's32[2]{0}', space=sflag, size = 0x8, scoped, tag = 'scoped memory for tpu_custom_call.1']
    #allocation6 [shape = 'u8[16384]{0}', space=vmem, size = 0x4000, scoped, tag = 'input window, operand 1']
    #allocation7 [shape = 'u8[16384]{0}', space=vmem, size = 0x4000, scoped, tag = 'output window, operand 0']
    %7 = vsyncpa [#allocation5], 0
    %8 = vsyncpa [#allocation3], 0
    %s9 = scalar_lea.sflag [#allocation3], 1
    %10 = vsyncpa %s9, 0
    %11 = vsyncpa [#allocation4], 0
    %s12 = scalar_lea.sflag [#allocation4], 1
    %13 = vsyncpa %s12, 0
    loop: start=0, step=1, limit=4
    $region2: #{tpu_custom_call.1} parent=1 // loop_pre_header
      _
    $region3: #{tpu_custom_call.1} parent=1 // loop_header
      %s15 = sphi 0, %s19
      %p16 = scmp.ge.s32.totalorder %s15, 4
      %s23 = sphi 0, %s23
      %s25 = sphi 0, %s23
      %s26 = sphi 0, %s25
      %s40 = sphi 0, %s26
      %s46 = sphi 0, %s48
      %s49 = sphi 0, %s46
      %s50 = sphi 0, %s49
      %s66 = sphi 0, %s50
      %s72 = sphi 0, %s74
      %s75 = sphi 0, %s72
      %s76 = sphi 0, %s75
      %s92 = sphi 0, %s76
    $region4: #{tpu_custom_call.1} parent=1 // loop_header_branch
      %18 = sbr.rel (%p16) target = $region8
    $region5: #{tpu_custom_call.1} parent=1 // loop_body
      %s20 = ssub.s32 %s15, 1
      %s21 = ssub.s32 %s15, 2
      %s22 = sadd.s32 %s15, 1
      %s24 = sadd.s32 %s23, 1
      %p27 = scmp.eq.s32.totalorder %s15, 1
      %p28 = scmp.ne.s32.totalorder %s23, %s25
      %p29 = scmp.eq.s32.totalorder %s15, 0
      %p30 = por %p28, %p29
      %p31 = scmp.ne.s32.totalorder %s23, %s25
      %p32 = scmp.eq.s32.totalorder %s20, 1
      %p33 = por %p31, %p32
      %p34 = scmp.ne.s32.totalorder %s25, %s26
      %p35 = scmp.eq.s32.totalorder %s20, 0
      %p36 = por %p34, %p35
      %p37 = scmp.ne.s32.totalorder %s25, %s26
      %p38 = scmp.eq.s32.totalorder %s21, 1
      %p39 = por %p37, %p38
      %p41 = scmp.ne.s32.totalorder %s26, %s40
      %p42 = scmp.eq.s32.totalorder %s21, 0
      %p43 = por %p41, %p42
      %s44 = ssub.s32 %s15, %s22
      %p45 = scmp.eq.s32.totalorder %s44, 0
      %s47 = sadd.s32 %s46, 1
      %s48 = scalar_select %p45, %s46, %s47
      %p51 = pneg %p45
      %p52 = scmp.eq.s32.totalorder %s15, 1
      %p53 = por %p51, %p52
      %p54 = scmp.ne.s32.totalorder %s46, %s49
      %p55 = scmp.eq.s32.totalorder %s15, 0
      %p56 = por %p54, %p55
      %p57 = scmp.ne.s32.totalorder %s46, %s49
      %p58 = scmp.eq.s32.totalorder %s20, 1
      %p59 = por %p57, %p58
      %p60 = scmp.ne.s32.totalorder %s49, %s50
      %p61 = scmp.eq.s32.totalorder %s20, 0
      %p62 = por %p60, %p61
      %p63 = scmp.ne.s32.totalorder %s49, %s50
      %p64 = scmp.eq.s32.totalorder %s21, 1
      %p65 = por %p63, %p64
      %p67 = scmp.ne.s32.totalorder %s50, %s66
      %p68 = scmp.eq.s32.totalorder %s21, 0
      %p69 = por %p67, %p68
      %s70 = ssub.s32 %s15, %s22
      %p71 = scmp.eq.s32.totalorder %s70, 0
      %s73 = sadd.s32 %s72, 1
      %s74 = scalar_select %p71, %s72, %s73
      %p77 = pneg %p71
      %p78 = scmp.eq.s32.totalorder %s15, 1
      %p79 = por %p77, %p78
      %p80 = scmp.ne.s32.totalorder %s72, %s75
      %p81 = scmp.eq.s32.totalorder %s15, 0
      %p82 = por %p80, %p81
      %p83 = scmp.ne.s32.totalorder %s72, %s75
      %p84 = scmp.eq.s32.totalorder %s20, 1
      %p85 = por %p83, %p84
      %p86 = scmp.ne.s32.totalorder %s75, %s76
      %p87 = scmp.eq.s32.totalorder %s20, 0
      %p88 = por %p86, %p87
      %p89 = scmp.ne.s32.totalorder %s75, %s76
      %p90 = scmp.eq.s32.totalorder %s21, 1
      %p91 = por %p89, %p90
      %p93 = scmp.ne.s32.totalorder %s76, %s92
      %p94 = scmp.eq.s32.totalorder %s21, 0
      %p95 = por %p93, %p94
      %p96 = scmp.le.s32.totalorder 1, %s15
      %p97 = scmp.lt.s32.totalorder %s15, 3
      %p98 = pnand %p96, %p97
      %p99 = pneg %p98
      // Predicated region
      $region9: #{tpu_custom_call.1} parent=5 // pred_check
        _
      $region10: #{tpu_custom_call.1} parent=5 // pred_check_branch
        %101 = sbr.rel (%p98) target = $region12
      $region11: #{tpu_custom_call.1} parent=5 // pred_region
        %s102 = ssub.s32 %s15, 1
        // Predicated region
        $region13: #{tpu_custom_call.1} parent=11 // pred_check
          %p103 = pneg %p36
        $region14: #{tpu_custom_call.1} parent=11 // pred_check_branch
          %105 = sbr.rel (%p103) target = $region16
        $region15: #{tpu_custom_call.1} parent=11 // pred_region
          %s107 = ssub.s32 16, 16
          %108 = vsyncadd [#allocation5], %s107
          %111 = dma.hbm_to_smem %s0, 16, [#allocation2], [#allocation5]
        $region16: #{tpu_custom_call.1} parent=11 // pred_fallthru
          _
      $region12: #{tpu_custom_call.1} parent=5 // pred_fallthru
        _
      %p112 = scmp.lt.s32.totalorder %s15, 2
      // Predicated region
      $region17: #{tpu_custom_call.1} parent=5 // pred_check
        %p113 = pneg %p112
      $region18: #{tpu_custom_call.1} parent=5 // pred_check_branch
        %115 = sbr.rel (%p113) target = $region20
      $region19: #{tpu_custom_call.1} parent=5 // pred_region
        // Predicated region
        $region21: #{tpu_custom_call.1} parent=19 // pred_check
          %p116 = pneg %p56
        $region22: #{tpu_custom_call.1} parent=19 // pred_check_branch
          %118 = sbr.rel (%p116) target = $region24
        $region23: #{tpu_custom_call.1} parent=19 // pred_region
          %s119 = sand.u32 %s46, 1
          %s120 = scalar_lea.sflag [#allocation3], %s119
          %s121 = sand.u32 %s46, 1
          %s122 = smul.addr %s121, 16
          %s123 = scalar_lea.vmem [#allocation6], %s122
          %s125 = ssub.s32 256, 128
          %126 = vsyncadd %s120, %s125
          %s127 = smul.addr %s15, 2
          %s128 = smul.addr %s127, 64
          %s129 = scalar_lea.hbm %s1, %s128
          %s130 = sshll.u32 %s123, 4
          %s131 = int_to_ptr.vmem [resolvable:$true] %s130
          %136 = dma.hbm_to_vmem [thread:$0]  %s129, 128, %s131, %s120, 128, 128, 8
        $region24: #{tpu_custom_call.1} parent=19 // pred_fallthru
          _
      $region20: #{tpu_custom_call.1} parent=5 // pred_fallthru
        _
      %p137 = scmp.le.s32.totalorder 1, %s15
      %p138 = scmp.lt.s32.totalorder %s15, 3
      %p139 = pnand %p137, %p138
      %p140 = pneg %p139
      // Predicated region
      $region25: #{tpu_custom_call.1} parent=5 // pred_check
        _
      $region26: #{tpu_custom_call.1} parent=5 // pred_check_branch
        %142 = sbr.rel (%p139) target = $region28
      $region27: #{tpu_custom_call.1} parent=5 // pred_region
        %s143 = ssub.s32 %s15, 1
        // Predicated region
        $region29: #{tpu_custom_call.1} parent=27 // pred_check
          %p144 = pneg %p36
        $region30: #{tpu_custom_call.1} parent=27 // pred_check_branch
          %146 = sbr.rel (%p144) target = $region32
        $region31: #{tpu_custom_call.1} parent=27 // pred_region
          %147 = dma.done [#allocation5], 16
        $region32: #{tpu_custom_call.1} parent=27 // pred_fallthru
          _
        %s148 = sand.u32 %s49, 1
        %s149 = scalar_lea.sflag [#allocation3], %s148
        %s150 = sand.u32 %s49, 1
        %s151 = smul.addr %s150, 16
        %s152 = scalar_lea.vmem [#allocation6], %s151
        // Predicated region
        $region33: #{tpu_custom_call.1} parent=27 // pred_check
          %p153 = pneg %p62
        $region34: #{tpu_custom_call.1} parent=27 // pred_check_branch
          %155 = sbr.rel (%p153) target = $region36
        $region35: #{tpu_custom_call.1} parent=27 // pred_region
          %156 = dma.done %s149, 256
        $region36: #{tpu_custom_call.1} parent=27 // pred_fallthru
          _
        %157 = sfence
        %p158 = pneg %p36
        %p159 = pneg %p33
        %s160 = sand.u32 %s49, 1
        %s161 = scalar_lea.sflag [#allocation3], %s160
        %s162 = sand.u32 %s49, 1
        %s163 = smul.addr %s162, 16
        %s164 = scalar_lea.vmem [#allocation6], %s163
        %p165 = pneg %p62
        %p166 = pneg %p59
        %p167 = pneg %p88
        %p168 = pneg %p85
        %s169 = sand.u32 %s75, 1
        %s170 = scalar_lea.sflag [#allocation4], %s169
        %s171 = sand.u32 %s75, 1
        %s172 = smul.addr %s171, 16
        %s173 = scalar_lea.vmem [#allocation7], %s172
        %v174 = vld [vmem:[%s152] sm:$0xff]
        %v175 = vld [vmem:[%s152 + $0x8] sm:$0xff]
        %v178 = vcombine.low %v174, %v175
        %v179 = vcombine.high %v174, %v175
        %vm182 = vcmask 556032
        %v183 = vsel %vm182, %v179, 0.0
        %v184 = vadd.f32 %v178, %v183
        %185 = vadd.xlane.f32.xlu0 %v184
        %v186 = vpop.xlane.xlu0 %185
        %v187 = vmul.f32 %v186, 0.0051020407
        %s188 = sld [smem:[#allocation2]]
        %s189 = sld [smem:[#allocation2 + $0x1]]
        %s190 = sld [smem:[#allocation2 + $0x2]]
        %v191 = vlaneseq
        %v192 = vshrl.u32 %v191, 7
        %v193 = vrot.slane %v187, 7
        %v194 = vadd.s32 %v192, 4294967295
        %vm195 = vcmp.ge.s32.totalorder %v194, 0
        %vm196 = vcmp.lt.s32.totalorder %v194, 4
        %vm197 = vmand %vm195, %vm196
        %v198 = vsel %vm197, %v193, 0.0
        %v199 = vstv %s188
        %v200 = vmul.f32 %v199, %v198
        %v201 = vadd.f32 %v200, 0.0
        %vm202 = vcmp.ge.s32.totalorder %v192, 0
        %vm203 = vcmp.lt.s32.totalorder %v192, 4
        %vm204 = vmand %vm202, %vm203
        %v205 = vsel %vm204, %v187, 0.0
        %v206 = vstv %s189
        %v207 = vmul.f32 %v206, %v205
        %v208 = vadd.f32 %v201, %v207
        %v209 = vrot.slane %v187, 1
        %v210 = vadd.s32 %v192, 1
        %vm211 = vcmp.ge.s32.totalorder %v210, 0
        %vm212 = vcmp.lt.s32.totalorder %v210, 4
        %vm213 = vmand %vm211, %vm212
        %v214 = vsel %vm213, %v209, 0.0
        %v215 = vstv %s190
        %v216 = vmul.f32 %v215, %v214
        %v217 = vadd.f32 %v208, %v216
        %v218 = vxor.u32 %v217, 2147483648
        %v219 = vmul.f32 %v218, 1.442695
        %v220 = vpow.pop %v219
        %v221 = vadd.f32 %v220, 1.0
        %v222 = vrcp.pop %v221
        %v223 = vmul.f32 1.0, %v222
        %225 = vset.pattern.permute.xlu0 0
        %226 = vperm.xlu0 %225, %v223
        %v227 = vpop.permute.xlu0 %226
        %v229 = vunpack.c.l.s4 839922192
        %v230 = vunpack.c.0.s8 %v229
        %v231 = vlaneseq
        %v232 = vshrl.u32 %v231, 7
        %v233 = vsub.s32 %v230, %v232
        %v234 = vrot.slane %v227, %v233
        %v236 = vunpack.c.l.s4 1985246804
        %v237 = vunpack.c.0.s8 %v236
        %v238 = vlaneseq
        %v239 = vshrl.u32 %v238, 7
        %v240 = vsub.s32 %v237, %v239
        %v241 = vrot.slane %v227, %v240
        %v244 = vmul.f32 %v174, %v234
        %v245 = vmul.f32 %v175, %v241
        %vm246 = vcmask 1043456
        %vm247 = vcmask 556036
        %vm248 = vmor %vm247, %vm246
        %249 = vst.msk [vmem:[%s173] sm:$0xff] %vm248, %v244
        %250 = vst.msk [vmem:[%s173 + $0x8] sm:$0xff] %vm248, %v245
        %s251 = sand.u32 %s75, 1
        %s252 = scalar_lea.sflag [#allocation4], %s251
        %s253 = sand.u32 %s75, 1
        %s254 = smul.addr %s253, 16
        %s255 = scalar_lea.vmem [#allocation7], %s254
        // Predicated region
        $region37: #{tpu_custom_call.1} parent=27 // pred_check
          %p256 = pneg %p85
        $region38: #{tpu_custom_call.1} parent=27 // pred_check_branch
          %258 = sbr.rel (%p256) target = $region40
        $region39: #{tpu_custom_call.1} parent=27 // pred_region
          %s260 = ssub.s32 256, 128
          %261 = vsyncadd %s252, %s260
          %s262 = smul.addr %s20, 2
          %s263 = smul.addr %s262, 64
          %s264 = scalar_lea.hbm %s2, %s263
          %s265 = sshll.u32 %s255, 4
          %s266 = int_to_ptr.vmem [resolvable:$true] %s265
          %271 = dma.vmem_to_hbm [thread:$0]  %s266, 128, %s264, %s252, 128, 128, 8
        $region40: #{tpu_custom_call.1} parent=27 // pred_fallthru
          _
      $region28: #{tpu_custom_call.1} parent=5 // pred_fallthru
        _
      %p272 = scmp.le.s32.totalorder 2, %s15
      // Predicated region
      $region41: #{tpu_custom_call.1} parent=5 // pred_check
        %p273 = pneg %p272
      $region42: #{tpu_custom_call.1} parent=5 // pred_check_branch
        %275 = sbr.rel (%p273) target = $region44
      $region43: #{tpu_custom_call.1} parent=5 // pred_region
        %s276 = ssub.s32 %s15, 2
        // Predicated region
        $region45: #{tpu_custom_call.1} parent=43 // pred_check
          %p277 = pneg %p91
        $region46: #{tpu_custom_call.1} parent=43 // pred_check_branch
          %279 = sbr.rel (%p277) target = $region48
        $region47: #{tpu_custom_call.1} parent=43 // pred_region
          %s280 = sand.u32 %s76, 1
          %s281 = scalar_lea.sflag [#allocation4], %s280
          %s282 = sand.u32 %s76, 1
          %s283 = smul.addr %s282, 16
          %s284 = scalar_lea.vmem [#allocation7], %s283
          %285 = dma.done %s281, 256
        $region48: #{tpu_custom_call.1} parent=43 // pred_fallthru
          _
      $region44: #{tpu_custom_call.1} parent=5 // pred_fallthru
        _
    $region6: #{tpu_custom_call.1} parent=1 // loop_footer
      %s19 = sadd.s32 1, %s15
    $region7: #{tpu_custom_call.1} parent=1 // loop_footer_branch
      %14 = sbr.rel target = $region3
    $region8: #{tpu_custom_call.1} parent=1 // loop_exit
      _
    %286 = vsyncpa [#allocation3], 1
    %s287 = scalar_lea.sflag [#allocation3], 1
    %288 = vsyncpa %s287, 1
    %289 = vsyncpa [#allocation4], 1
    %s290 = scalar_lea.sflag [#allocation4], 1
    %291 = vsyncpa %s290, 1
    %292 = vsyncpa [#allocation5], 1
    %s293 = scalar_lea.sflag [#allocation5], 1
    %294 = vsyncpa %s293, 1

</llo_original>
